<compile_context>
chip_gen: v7x
topology: tpu7x:2x2x1
jax: 0.10.0
libtpu: 0.0.40
codegen_flags: <defaults>
</compile_context>

<pallas_src>
import functools

import jax
import jax.numpy as jnp
from jax import lax
from jax.experimental import pallas as pl
from jax.experimental.pallas import tpu as pltpu

ALPHA = 2.0
GAMMA = 1.5
POS_WEIGHT = 1.0

_LANES = 128
_BLOCK_ROWS = 2048  # 2048 x 128 x 4B = 1 MiB per input block; safe on v5e/v6e/v7x.


def _round_up(x, m):
    return ((x + m - 1) // m) * m


def _focal_loss_kernel(x_ref, y_ref, out_ref, *, alpha, gamma, pos_weight,
                       n_valid, block_rows):
    i = pl.program_id(0)

    x = x_ref[...].astype(jnp.float32)
    y = y_ref[...].astype(jnp.float32)

    # Numerically-stable BCE with logits (matches torch's
    # binary_cross_entropy_with_logits with pos_weight):
    #   bce = (1 - y) * x + (1 + (pw - 1) * y) * softplus(-x)
    softplus_neg_x = jnp.maximum(-x, 0.0) + jnp.log1p(jnp.exp(-jnp.abs(x)))
    bce = (1.0 - y) * x + (1.0 + (pos_weight - 1.0) * y) * softplus_neg_x

    pt = jnp.exp(-bce)
    one_minus_pt = jnp.maximum(1.0 - pt, 0.0)

    # (1 - pt) ** gamma, specialized to avoid exp(gamma * log(x)) on the EUP.
    if gamma == 1.5:
        focal_w = one_minus_pt * jnp.sqrt(one_minus_pt)
    elif gamma == 2.0:
        focal_w = one_minus_pt * one_minus_pt
    elif gamma == 1.0:
        focal_w = one_minus_pt
    else:
        focal_w = jnp.power(one_minus_pt, gamma)

    focal = alpha * focal_w * bce

    # Mask out padded / out-of-bounds elements of the (possibly ragged) block.
    row = lax.broadcasted_iota(jnp.int32, (block_rows, _LANES), 0)
    lane = lax.broadcasted_iota(jnp.int32, (block_rows, _LANES), 1)
    idx = (i * block_rows + row) * _LANES + lane
    focal = jnp.where(idx < n_valid, focal, 0.0)

    # Reduce to a single vreg-shaped partial with VPU adds only (no per-step XLU).
    out_ref[0, :, :] = jnp.sum(focal.reshape(block_rows // 8, 8, _LANES), axis=0)


def focal_loss(inputs, targets, *, alpha=ALPHA, gamma=GAMMA,
               pos_weight=POS_WEIGHT, block_rows=_BLOCK_ROWS):
    assert inputs.shape == targets.shape
    n_valid = int(inputs.size)

    x_flat = inputs.reshape(-1)
    y_flat = targets.reshape(-1)

    # Only pad when the flat size is not lane-aligned (rare for NCHW images);
    # avoids a full HBM copy of both inputs on the common path.
    pad = (-n_valid) % _LANES
    if pad:
        x_flat = jnp.pad(x_flat, (0, pad))
        y_flat = jnp.pad(y_flat, (0, pad))

    rows = (n_valid + pad) // _LANES
    x2 = x_flat.reshape(rows, _LANES)
    y2 = y_flat.reshape(rows, _LANES)

    # Shrink the block for tiny inputs; keep it sublane-aligned (multiple of 8).
    blk = min(block_rows, _round_up(rows, 8))
    num_blocks = pl.cdiv(rows, blk)

    kernel = functools.partial(
        _focal_loss_kernel,
        alpha=float(alpha), gamma=float(gamma), pos_weight=float(pos_weight),
        n_valid=n_valid, block_rows=blk)

    in_spec = pl.BlockSpec((blk, _LANES), lambda i: (i, 0))
    partials = pl.pallas_call(
        kernel,
        out_shape=jax.ShapeDtypeStruct((num_blocks, 8, _LANES), jnp.float32),
        grid_spec=pltpu.PrefetchScalarGridSpec(
            num_scalar_prefetch=0,
            grid=(num_blocks,),
            in_specs=[in_spec, in_spec],
            out_specs=pl.BlockSpec((1, 8, _LANES), lambda i: (i, 0, 0)),
        ),
        compiler_params=pltpu.CompilerParams(
            dimension_semantics=("parallel",)),
    )(x2, y2)

    # Final tiny reduction + mean in XLA (also keeps v7x megacore partials separate).
    return jnp.sum(partials) / jnp.float32(n_valid)


def _focal_loss_ref(inputs, targets, *, alpha=ALPHA, gamma=GAMMA, pos_weight=POS_WEIGHT):
    x = inputs.astype(jnp.float32)
    y = targets.astype(jnp.float32)
    softplus_neg_x = jnp.maximum(-x, 0.0) + jnp.log1p(jnp.exp(-jnp.abs(x)))
    bce = (1.0 - y) * x + (1.0 + (pos_weight - 1.0) * y) * softplus_neg_x
    pt = jnp.exp(-bce)
    focal = alpha * jnp.power(jnp.maximum(1.0 - pt, 0.0), gamma) * bce
    return jnp.mean(focal)


if __name__ == "__main__":
    key = jax.random.PRNGKey(0)
    k1, k2, k3, k4 = jax.random.split(key, 4)

    # U-Net style binary segmentation: logits and {0,1} targets, NCHW.
    x = jax.random.normal(k1, (2, 4, 16, 16), dtype=jnp.float32) * 2.0
    t = (jax.random.uniform(k2, (2, 4, 16, 16)) > 0.5).astype(jnp.float32)

    loss = jax.block_until_ready(focal_loss(x, t))
    ref = jax.block_until_ready(_focal_loss_ref(x, t))
    assert jnp.allclose(loss, ref, rtol=1e-5, atol=1e-6), (loss, ref)

    # Ragged (non-multiple-of-128) shape exercises the in-kernel index mask + pad path.
    x2 = jax.random.normal(k3, (2, 3, 7, 5), dtype=jnp.float32) * 2.0
    t2 = (jax.random.uniform(k4, (2, 3, 7, 5)) > 0.5).astype(jnp.float32)
    loss2 = jax.block_until_ready(focal_loss(x2, t2))
    ref2 = jax.block_until_ready(_focal_loss_ref(x2, t2))
    assert jnp.allclose(loss2, ref2, rtol=1e-5, atol=1e-6), (loss2, ref2)

    print("KERNEL_OK")
</pallas_src>

<mosaic_0001>
module attributes {stable_mosaic.version = 11 : i64} {
  func.func @_focal_loss_kernel(%arg0: i32, %arg1: memref<16x128xf32, #tpu.memory_space<vmem>>, %arg2: memref<16x128xf32, #tpu.memory_space<vmem>>, %arg3: memref<1x8x128xf32, #tpu.memory_space<vmem>>) attributes {dimension_semantics = [#tpu.dimension_semantics<parallel>], iteration_bounds = array<i64: 1>, scalar_prefetch = 0 : i64, scratch_operands = 0 : i64, tpu.core_type = #tpu.core_type<tc>, window_params = [{transform_indices = @transform_0, window_bounds = array<i64: 16, 128>}, {transform_indices = @transform_1, window_bounds = array<i64: 16, 128>}, {transform_indices = @transform_2, window_bounds = array<i64: 1, 8, 128>}]} {
    %c0 = arith.constant 0 : index
    %c0_0 = arith.constant 0 : index
    %0 = vector.load %arg1[%c0, %c0_0] : memref<16x128xf32, #tpu.memory_space<vmem>>, vector<16x128xf32>
    %c0_1 = arith.constant 0 : index
    %c0_2 = arith.constant 0 : index
    %1 = vector.load %arg2[%c0_1, %c0_2] : memref<16x128xf32, #tpu.memory_space<vmem>>, vector<16x128xf32>
    %cst = arith.constant 0.000000e+00 : f32
    %2 = vector.broadcast %cst : f32 to vector<16x128xf32>
    %3 = arith.subf %2, %0 : vector<16x128xf32>
    %cst_3 = arith.constant 0.000000e+00 : f32
    %4 = vector.broadcast %cst_3 : f32 to vector<16x128xf32>
    %5 = arith.maximumf %3, %4 : vector<16x128xf32>
    %6 = math.absf %0 : vector<16x128xf32>
    %cst_4 = arith.constant 0.000000e+00 : f32
    %7 = vector.broadcast %cst_4 : f32 to vector<16x128xf32>
    %8 = arith.subf %7, %6 : vector<16x128xf32>
    %9 = math.exp %8 : vector<16x128xf32>
    %10 = math.log1p %9 : vector<16x128xf32>
    %11 = arith.addf %5, %10 : vector<16x128xf32>
    %cst_5 = arith.constant 1.000000e+00 : f32
    %12 = vector.broadcast %cst_5 : f32 to vector<16x128xf32>
    %13 = arith.subf %12, %1 : vector<16x128xf32>
    %14 = arith.mulf %13, %0 : vector<16x128xf32>
    %cst_6 = arith.constant 0.000000e+00 : f32
    %15 = vector.broadcast %cst_6 : f32 to vector<16x128xf32>
    %16 = arith.mulf %15, %1 : vector<16x128xf32>
    %cst_7 = arith.constant 1.000000e+00 : f32
    %17 = vector.broadcast %cst_7 : f32 to vector<16x128xf32>
    %18 = arith.addf %17, %16 : vector<16x128xf32>
    %19 = arith.mulf %18, %11 : vector<16x128xf32>
    %20 = arith.addf %14, %19 : vector<16x128xf32>
    %cst_8 = arith.constant 0.000000e+00 : f32
    %21 = vector.broadcast %cst_8 : f32 to vector<16x128xf32>
    %22 = arith.subf %21, %20 : vector<16x128xf32>
    %23 = math.exp %22 : vector<16x128xf32>
    %cst_9 = arith.constant 1.000000e+00 : f32
    %24 = vector.broadcast %cst_9 : f32 to vector<16x128xf32>
    %25 = arith.subf %24, %23 : vector<16x128xf32>
    %cst_10 = arith.constant 0.000000e+00 : f32
    %26 = vector.broadcast %cst_10 : f32 to vector<16x128xf32>
    %27 = arith.maximumf %25, %26 : vector<16x128xf32>
    %28 = math.sqrt %27 : vector<16x128xf32>
    %29 = arith.mulf %27, %28 : vector<16x128xf32>
    %cst_11 = arith.constant 2.000000e+00 : f32
    %30 = vector.broadcast %cst_11 : f32 to vector<16x128xf32>
    %31 = arith.mulf %30, %29 : vector<16x128xf32>
    %32 = arith.mulf %31, %20 : vector<16x128xf32>
    %33 = tpu.iota {dimensions = array<i32: 0>} : vector<16x128xi32>
    %34 = tpu.iota {dimensions = array<i32: 1>} : vector<16x128xi32>
    %c16_i32 = arith.constant 16 : i32
    %35 = arith.muli %arg0, %c16_i32 : i32
    %36 = vector.broadcast %35 : i32 to vector<16x128xi32>
    %37 = arith.addi %36, %33 : vector<16x128xi32>
    %c128_i32 = arith.constant 128 : i32
    %38 = vector.broadcast %c128_i32 : i32 to vector<16x128xi32>
    %39 = arith.muli %37, %38 : vector<16x128xi32>
    %40 = arith.addi %39, %34 : vector<16x128xi32>
    %c2048_i32 = arith.constant 2048 : i32
    %41 = vector.broadcast %c2048_i32 : i32 to vector<16x128xi32>
    %42 = arith.cmpi slt, %40, %41 : vector<16x128xi32>
    %cst_12 = arith.constant 0.000000e+00 : f32
    %43 = vector.broadcast %cst_12 : f32 to vector<16x128xf32>
    %44 = arith.select %42, %32, %43 : vector<16x128xi1>, vector<16x128xf32>
    %45 = vector.shape_cast %44 : vector<16x128xf32> to vector<2x8x128xf32>
    %cst_13 = arith.constant dense<0.000000e+00> : vector<8x128xf32>
    %46 = vector.multi_reduction <add>, %45, %cst_13 [0] : vector<2x8x128xf32> to vector<8x128xf32>
    %c0_14 = arith.constant 0 : index
    %c0_15 = arith.constant 0 : index
    %c0_16 = arith.constant 0 : index
    %47 = vector.load %arg3[%c0_14, %c0_15, %c0_16] : memref<1x8x128xf32, #tpu.memory_space<vmem>>, vector<1x8x128xf32>
    %48 = vector.shape_cast %47 : vector<1x8x128xf32> to vector<8x128xf32>
    %49 = vector.shape_cast %46 : vector<8x128xf32> to vector<1x8x128xf32>
    tpu.vector_store %arg3[%c0_14, %c0_15, %c0_16], %49 {strides = array<i32>} : memref<1x8x128xf32, #tpu.memory_space<vmem>>, vector<1x8x128xf32>,
    return
  }
  func.func @transform_0(%arg0: i32) -> (i32, i32) {
    %c0_i32 = arith.constant 0 : i32
    %c0_i32_0 = arith.constant 0 : i32
    return %arg0, %c0_i32 : i32, i32
  }
  func.func @transform_1(%arg0: i32) -> (i32, i32) {
    %c0_i32 = arith.constant 0 : i32
    %c0_i32_0 = arith.constant 0 : i32
    return %arg0, %c0_i32 : i32, i32
  }
  func.func @transform_2(%arg0: i32) -> (i32, i32, i32) {
    %c0_i32 = arith.constant 0 : i32
    %c0_i32_0 = arith.constant 0 : i32
    %c0_i32_1 = arith.constant 0 : i32
    return %arg0, %c0_i32, %c0_i32_0 : i32, i32, i32
  }
}

</mosaic_0001>

<llo_original>
// kernel: tpu_custom_call.1
$region0: #{tpu_custom_call.1}
  #allocation0 [shape = 'u32[]', space=smem, size = 0x4, offset = 0x4, fixed_abs, tag = 'smem constant byte address 0x4 - core index']
  #allocation1 [shape = 'u32[144,128]{1,0:T(1,128)}', space=vmem, size = 0x12000, scoped, tag = 'internal scratch']
  %s0 = inlined_call_operand.hbm [shape: f32[16,128], index: 0, kind: input, shape index: {}]
  %s1 = inlined_call_operand.hbm [shape: f32[16,128], index: 1, kind: input, shape index: {}]
  %s2 = inlined_call_operand.hbm [shape: f32[1,8,128], index: 2, kind: output, shape index: {}]
  %s3 = sld [smem:[#allocation0]]
  $region26: #{tpu_custom_call.1} parent=0
    _
  %s5 = ssub.s32 1, %s3
  %s6 = scalar_select 0, %s5, %s3
  $region1: #{tpu_custom_call.1} parent=0
    #allocation2 [shape = 'u8[8192]{0}', space=vmem, size = 0x2000, scoped, tag = 'input window, operand 0, single buffered']
    #allocation3 [shape = 's32[1]{0}', space=sflag, size = 0x4, scoped, tag = 'scoped memory for tpu_custom_call.1']
    #allocation4 [shape = 's32[1]{0}', space=sflag, size = 0x4, scoped, tag = 'scoped memory for tpu_custom_call.1']
    #allocation5 [shape = 'u8[8192]{0}', space=vmem, size = 0x2000, scoped, tag = 'input window, operand 1, single buffered']
    #allocation6 [shape = 's32[1]{0}', space=sflag, size = 0x4, scoped, tag = 'scoped memory for tpu_custom_call.1']
    #allocation7 [shape = 'u8[4096]{0}', space=vmem, size = 0x1000, scoped, tag = 'output window, operand 0, single buffered']
    %7 = vsyncpa [#allocation3], 0
    %8 = vsyncpa [#allocation6], 0
    %9 = vsyncpa [#allocation4], 0
    // Predicated region
    $region2: #{tpu_custom_call.1} parent=1 // pred_check
      _
    $region3: #{tpu_custom_call.1} parent=1 // pred_check_branch
      %11 = sbr.rel (0) target = $region5
    $region4: #{tpu_custom_call.1} parent=1 // pred_region
      %s13 = ssub.s32 256, 256
      %14 = vsyncadd [#allocation3], %s13
      %s15 = sshll.u32 [#allocation2], 4
      %s16 = int_to_ptr.vmem [resolvable:$true] %s15
      %21 = dma.hbm_to_vmem [thread:$0]  %s0, 256, %s16, [#allocation3], 128, 128, 8
    $region5: #{tpu_custom_call.1} parent=1 // pred_fallthru
      _
    // Predicated region
    $region6: #{tpu_custom_call.1} parent=1 // pred_check
      _
    $region7: #{tpu_custom_call.1} parent=1 // pred_check_branch
      %23 = sbr.rel (0) target = $region9
    $region8: #{tpu_custom_call.1} parent=1 // pred_region
      %s25 = ssub.s32 256, 256
      %26 = vsyncadd [#allocation6], %s25
      %s27 = sshll.u32 [#allocation5], 4
      %s28 = int_to_ptr.vmem [resolvable:$true] %s27
      %33 = dma.hbm_to_vmem [thread:$0]  %s1, 256, %s28, [#allocation6], 128, 128, 8
    $region9: #{tpu_custom_call.1} parent=1 // pred_fallthru
      _
    // Predicated region
    $region10: #{tpu_custom_call.1} parent=1 // pred_check
      _
    $region11: #{tpu_custom_call.1} parent=1 // pred_check_branch
      %35 = sbr.rel (0) target = $region13
    $region12: #{tpu_custom_call.1} parent=1 // pred_region
      %36 = dma.done [#allocation3], 256
    $region13: #{tpu_custom_call.1} parent=1 // pred_fallthru
      _
    // Predicated region
    $region14: #{tpu_custom_call.1} parent=1 // pred_check
      _
    $region15: #{tpu_custom_call.1} parent=1 // pred_check_branch
      %38 = sbr.rel (0) target = $region17
    $region16: #{tpu_custom_call.1} parent=1 // pred_region
      %39 = dma.done [#allocation6], 256
    $region17: #{tpu_custom_call.1} parent=1 // pred_fallthru
      _
    %v40 = vld [vmem:[#allocation2] sm:$0xff]
    %v41 = vld [vmem:[#allocation2 + $0x8] sm:$0xff]
    %v42 = vld [vmem:[#allocation5] sm:$0xff]
    %v43 = vld [vmem:[#allocation5 + $0x8] sm:$0xff]
    %v44 = vsub.f32 0.0, %v40
    %v45 = vsub.f32 0.0, %v41
    %v46 = vmax.f32 %v44, 0.0
    %v47 = vmax.f32 %v45, 0.0
    %v48 = vand.u32 2147483647, %v40
    %v49 = vand.u32 2147483647, %v41
    %v50 = vsub.f32 0.0, %v48
    %v51 = vsub.f32 0.0, %v49
    %v52 = vmul.f32 %v50, 1.442695
    %v53 = vpow.pop %v52
    %v54 = vmul.f32 %v51, 1.442695
    %v55 = vpow.pop %v54
    %v56 = vadd.f32 %v53, 1.0
    %v57 = vlog2.pop %v56
    %v58 = vmul.f32 %v57, 0.6931472
    %v59 = vmul.f32 -0.5, %v53
    %v60 = vadd.f32 %v59, 1.0
    %v61 = vmul.f32 %v60, %v53
    %v62 = vand.u32 2147483647, %v53
    %vm63 = vcmp.lt.f32.partialorder %v62, 0.0004427343
    %v64 = vsel %vm63, %v61, %v58
    %v65 = vadd.f32 %v55, 1.0
    %v66 = vlog2.pop %v65
    %v67 = vmul.f32 %v66, 0.6931472
    %v68 = vmul.f32 -0.5, %v55
    %v69 = vadd.f32 %v68, 1.0
    %v70 = vmul.f32 %v69, %v55
    %v71 = vand.u32 2147483647, %v55
    %vm72 = vcmp.lt.f32.partialorder %v71, 0.0004427343
    %v73 = vsel %vm72, %v70, %v67
    %v74 = vadd.f32 %v46, %v64
    %v75 = vadd.f32 %v47, %v73
    %v76 = vsub.f32 1.0, %v42
    %v77 = vsub.f32 1.0, %v43
    %v78 = vmul.f32 %v76, %v40
    %v79 = vmul.f32 %v77, %v41
    %v80 = vmul.f32 %v42, 0.0
    %v81 = vmul.f32 %v43, 0.0
    %v82 = vadd.f32 %v80, 1.0
    %v83 = vadd.f32 %v81, 1.0
    %v84 = vmul.f32 %v82, %v74
    %v85 = vmul.f32 %v83, %v75
    %v86 = vadd.f32 %v78, %v84
    %v87 = vadd.f32 %v79, %v85
    %v88 = vsub.f32 0.0, %v86
    %v89 = vsub.f32 0.0, %v87
    %v90 = vmul.f32 %v88, 1.442695
    %v91 = vpow.pop %v90
    %v92 = vmul.f32 %v89, 1.442695
    %v93 = vpow.pop %v92
    %v94 = vsub.f32 1.0, %v91
    %v95 = vsub.f32 1.0, %v93
    %v96 = vmax.f32 %v94, 0.0
    %v97 = vmax.f32 %v95, 0.0
    %v98 = vrsqrt.pop %v96
    %v99 = vmul.f32 %v96, %v98
    %vm100 = vcmp.eq.f32.partialorder %v96, inf
    %v101 = vsel %vm100, %v96, %v99
    %vm102 = vcmp.eq.f32.partialorder %v96, 0.0
    %v103 = vand.u32 %v96, 2147483648
    %v104 = vsel %vm102, %v103, %v101
    %v105 = vrsqrt.pop %v97
    %v106 = vmul.f32 %v97, %v105
    %vm107 = vcmp.eq.f32.partialorder %v97, inf
    %v108 = vsel %vm107, %v97, %v106
    %vm109 = vcmp.eq.f32.partialorder %v97, 0.0
    %v110 = vand.u32 %v97, 2147483648
    %v111 = vsel %vm109, %v110, %v108
    %v112 = vmul.f32 %v96, %v104
    %v113 = vmul.f32 %v97, %v111
    %v114 = vmul.f32 %v112, 2.0
    %v115 = vmul.f32 %v113, 2.0
    %v116 = vmul.f32 %v114, %v86
    %v117 = vmul.f32 %v115, %v87
    %v118 = vlaneseq
    %v119 = vshrl.u32 %v118, 7
    %v120 = vadd.s32 %v119, 8
    %v121 = vlaneseq
    %v122 = vand.u32 %v121, 127
    %s123 = smul.u32 0, 16
    %v124 = vstv %s123
    %v125 = vadd.s32 %v124, %v119
    %v126 = vadd.s32 %v124, %v120
    %v127 = vmul.u32 %v125, 128
    %v128 = vmul.u32 %v126, 128
    %v129 = vadd.s32 %v127, %v122
    %v130 = vadd.s32 %v128, %v122
    %vm131 = vcmp.lt.s32.totalorder %v129, 2048
    %vm132 = vcmp.lt.s32.totalorder %v130, 2048
    %v133 = vsel %vm131, %v116, 0.0
    %v134 = vsel %vm132, %v117, 0.0
    %v135 = vadd.f32 %v133, %v134
    %136 = vst [vmem:[#allocation7] sm:$0xff] %v135
    // Predicated region
    $region18: #{tpu_custom_call.1} parent=1 // pred_check
      _
    $region19: #{tpu_custom_call.1} parent=1 // pred_check_branch
      %138 = sbr.rel (0) target = $region21
    $region20: #{tpu_custom_call.1} parent=1 // pred_region
      %s140 = ssub.s32 128, 128
      %141 = vsyncadd [#allocation4], %s140
      %s143 = sshll.u32 [#allocation7], 4
      %s144 = int_to_ptr.vmem [resolvable:$true] %s143
      %146 = dma.vmem_to_hbm [thread:$0]  %s144, 128, %s2, [#allocation4]
    $region21: #{tpu_custom_call.1} parent=1 // pred_fallthru
      _
    // Predicated region
    $region22: #{tpu_custom_call.1} parent=1 // pred_check
      _
    $region23: #{tpu_custom_call.1} parent=1 // pred_check_branch
      %148 = sbr.rel (0) target = $region25
    $region24: #{tpu_custom_call.1} parent=1 // pred_region
      %149 = dma.done [#allocation4], 128
    $region25: #{tpu_custom_call.1} parent=1 // pred_fallthru
      _
    %150 = vsyncpa [#allocation3], 1
    %151 = vsyncpa [#allocation6], 1
    %152 = vsyncpa [#allocation4], 1

</llo_original>
